<compile_context>
chip_gen: v7x
topology: tpu7x:2x2x1
jax: 0.10.0
libtpu: 0.0.40
codegen_flags: <defaults>
</compile_context>

<pallas_src>
import functools
import math

import jax
import jax.numpy as jnp
from jax.experimental import pallas as pl
from jax.experimental.pallas import tpu as pltpu


def _attention_kernel(*refs, return_attn, mxu_dtype):
    if return_attn:
        (q_ref, k_ref, v_ref, bias_ref, wqkv_ref, bqkv_ref, wo_ref, bo_ref,
         out_ref, attn_ref) = refs
    else:
        (q_ref, k_ref, v_ref, bias_ref, wqkv_ref, bqkv_ref, wo_ref, bo_ref,
         out_ref) = refs
        attn_ref = None

    bb, s, d = q_ref.shape
    ms = bb * s

    def proj(x_ref, idx):
        # (bb, s, d) -> (bb*s, d) is a leading-dim merge (layout-free); one
        # clean MXU pass per projection, no zero-padding, no lane slicing.
        x = x_ref[...].reshape(ms, d).astype(mxu_dtype)
        w = wqkv_ref[idx].astype(mxu_dtype)          # (d, d)
        y = jnp.dot(x, w, preferred_element_type=jnp.float32) + bqkv_ref[idx]
        return y.reshape(bb, s, d)                   # leading-dim split only

    qp = proj(q_ref, 0)   # 1/sqrt(d_k) already folded into wq / bq by the prep
    kp = proj(k_ref, 1)
    vp = proj(v_ref, 2)

    # scores: batched QK^T, contraction on the last dim of both operands
    # (no explicit transpose -> no XLU pass / extra VMEM intermediate).
    scores = jax.lax.dot_general(
        qp.astype(mxu_dtype), kp.astype(mxu_dtype),
        dimension_numbers=(((2,), (2,)), ((0,), (0,))),
        preferred_element_type=jnp.float32,
    )                                                # (bb, s, s)

    # additive mask bias: 0 where kept, -1e9 where masked; broadcasts over the
    # query (sublane) axis.  Single VPU add instead of compare + select.
    scores = scores + bias_ref[...]

    # --- softmax over the key axis (kept in f32 on all generations) ----------
    m = jnp.max(scores, axis=-1, keepdims=True)
    e = jnp.exp(scores - m)
    denom = jnp.sum(e, axis=-1, keepdims=True)
    inv = pl.reciprocal(denom, approx=False)         # exact, keeps 1e-5 parity

    if return_attn:
        attn = e * inv                               # (bb, s, s)
        ctx = jax.lax.dot_general(
            attn.astype(mxu_dtype), vp.astype(mxu_dtype),
            dimension_numbers=(((2,), (1,)), ((0,), (0,))),
            preferred_element_type=jnp.float32,
        )                                            # (bb, s, d)
        attn_ref[...] = attn.astype(attn_ref.dtype)
    else:
        # Normalize the context (S*D elements) instead of the weights (S*S).
        ctx = jax.lax.dot_general(
            e.astype(mxu_dtype), vp.astype(mxu_dtype),
            dimension_numbers=(((2,), (1,)), ((0,), (0,))),
            preferred_element_type=jnp.float32,
        ) * inv

    # --- output projection with (bb*s) folded into M --------------------------
    out = (
        jnp.dot(ctx.reshape(ms, d).astype(mxu_dtype),
                wo_ref[...].astype(mxu_dtype),
                preferred_element_type=jnp.float32)
        + bo_ref[...]
    )                                                # (bb*s, d)
    out_ref[...] = out.reshape(bb, s, d).astype(out_ref.dtype)


def prepare_attention_params(params):
    """One-time weight prep (hoist out of the per-call path).

    params: dict with 'wq','bq','wk','bk','wv','bv','wo','bo' in PyTorch
    nn.Linear layout (weights (D, D), y = x @ W.T + b).

    Folds the 1/sqrt(d_k) attention scale into wq/bq and stacks the three
    projection weights/biases so the kernel sees a (3, D, D) / (3, 1, D) pair.
    """
    D = params["wq"].shape[0]
    scale = jnp.float32(1.0 / math.sqrt(D))          # d_k == d_model
    w_qkv = jnp.stack([params["wq"].T * scale,
                       params["wk"].T,
                       params["wv"].T]).astype(jnp.float32)        # (3, D, D)
    b_qkv = jnp.stack([params["bq"] * scale,
                       params["bk"],
                       params["bv"]]).astype(jnp.float32)[:, None, :]  # (3, 1, D)
    wo_t = params["wo"].T.astype(jnp.float32)                         # (D, D)
    bo = params["bo"].reshape(1, D).astype(jnp.float32)               # (1, D)
    return {"w_qkv": w_qkv, "b_qkv": b_qkv, "wo_t": wo_t, "bo": bo}


def attention_forward(q, k, v, mask, prepared, *, batch_block=None,
                      return_attn=True, mxu_dtype=jnp.float32):
    """Forward pass matching the PyTorch `Attention` module.

    q, k, v: (B, S, D); mask: (B, S) with 0 = masked.
    prepared: output of `prepare_attention_params` (computed once).
    batch_block: batch elements per grid step.  Default = full batch (single
      grid step; best on single-TensorCore v5e/v6e).  On v7x pass B//2 (B even)
      so grid=(2,) with "parallel" semantics feeds both TensorCores.
    return_attn: also return the (B, S, S) normalized attention weights (as the
      PyTorch module does).  Set False to skip the O(S^2) f32 writeback.
    mxu_dtype: dtype of MXU operands (jnp.bfloat16 for ~3x matmul throughput on
      v6e/v7x; softmax and accumulation stay f32).  Default f32 for parity.
    """
    B, S, D = q.shape
    if batch_block is None:
        batch_block = B
    assert B % batch_block == 0
    nb = B // batch_block

    # Per-call additive mask bias (O(B*S) work, computed once in the wrapper).
    bias = jnp.where(mask.reshape(B, 1, S) == 0,
                     jnp.float32(-1000000000.0), jnp.float32(0.0))

    out_shapes = [jax.ShapeDtypeStruct((B, S, D), q.dtype)]
    out_specs = [pl.BlockSpec((batch_block, S, D), lambda b: (b, 0, 0))]
    if return_attn:
        out_shapes.append(jax.ShapeDtypeStruct((B, S, S), jnp.float32))
        out_specs.append(pl.BlockSpec((batch_block, S, S), lambda b: (b, 0, 0)))

    kernel = functools.partial(_attention_kernel,
                               return_attn=return_attn, mxu_dtype=mxu_dtype)

    results = pl.pallas_call(
        kernel,
        out_shape=tuple(out_shapes),
        grid_spec=pltpu.PrefetchScalarGridSpec(
            num_scalar_prefetch=0,
            grid=(nb,),
            in_specs=[
                pl.BlockSpec((batch_block, S, D), lambda b: (b, 0, 0)),  # q
                pl.BlockSpec((batch_block, S, D), lambda b: (b, 0, 0)),  # k
                pl.BlockSpec((batch_block, S, D), lambda b: (b, 0, 0)),  # v
                pl.BlockSpec((batch_block, 1, S), lambda b: (b, 0, 0)),  # bias
                pl.BlockSpec((3, D, D), lambda b: (0, 0, 0)),            # w_qkv
                pl.BlockSpec((3, 1, D), lambda b: (0, 0, 0)),            # b_qkv
                pl.BlockSpec((D, D), lambda b: (0, 0)),                  # wo_t
                pl.BlockSpec((1, D), lambda b: (0, 0)),                  # bo
            ],
            out_specs=out_specs,
        ),
        compiler_params=pltpu.CompilerParams(
            dimension_semantics=("parallel",),
        ),
    )(q, k, v, bias, prepared["w_qkv"], prepared["b_qkv"],
      prepared["wo_t"], prepared["bo"])

    if return_attn:
        out, attn = results
        return out, attn
    (out,) = results
    return out


def _reference(q, k, v, mask, params):
    """Pure-JAX reference matching the PyTorch forward exactly."""
    D = q.shape[-1]
    kp = k @ params["wk"].T + params["bk"]
    qp = q @ params["wq"].T + params["bq"]
    vp = v @ params["wv"].T + params["bv"]
    w = jnp.einsum("bqd,bkd->bqk", qp, kp) / math.sqrt(D)
    m = mask[:, None, :]
    w = jnp.where(m == 0, -1000000000.0, w)
    nw = jax.nn.softmax(w, axis=-1)
    out = jnp.einsum("bqk,bkd->bqd", nw, vp)
    out = out @ params["wo"].T + params["bo"]
    return out, nw


if __name__ == "__main__":
    B, S, D = 2, 8, 32  # small shapes consistent with the module (d_model = D)

    key = jax.random.PRNGKey(0)
    keys = jax.random.split(key, 12)

    q = jax.random.normal(keys[0], (B, S, D), dtype=jnp.float32)
    k = jax.random.normal(keys[1], (B, S, D), dtype=jnp.float32)
    v = jax.random.normal(keys[2], (B, S, D), dtype=jnp.float32)
    mask = (jax.random.uniform(keys[3], (B, S)) > 0.3).astype(jnp.float32)
    mask = mask.at[:, 0].set(1.0)  # keep at least one unmasked key per row

    scale = 1.0 / math.sqrt(D)
    params = {
        "wq": jax.random.uniform(keys[4], (D, D), minval=-scale, maxval=scale),
        "bq": jax.random.uniform(keys[5], (D,), minval=-scale, maxval=scale),
        "wk": jax.random.uniform(keys[6], (D, D), minval=-scale, maxval=scale),
        "bk": jax.random.uniform(keys[7], (D,), minval=-scale, maxval=scale),
        "wv": jax.random.uniform(keys[8], (D, D), minval=-scale, maxval=scale),
        "bv": jax.random.uniform(keys[9], (D,), minval=-scale, maxval=scale),
        "wo": jax.random.uniform(keys[10], (D, D), minval=-scale, maxval=scale),
        "bo": jax.random.uniform(keys[11], (D,), minval=-scale, maxval=scale),
    }

    prepared = prepare_attention_params(params)   # one-time, hoisted

    # Full module semantics: (output, normalized_weights).
    out, attn = attention_forward(q, k, v, mask, prepared)
    out = jax.block_until_ready(out)
    attn = jax.block_until_ready(attn)

    ref_out, ref_attn = _reference(q, k, v, mask, params)
    assert jnp.allclose(out, ref_out, atol=1e-4, rtol=1e-4), "output mismatch"
    assert jnp.allclose(attn, ref_attn, atol=1e-5, rtol=1e-5), "attn mismatch"

    # Fast path without the O(S^2) attention-weights writeback.
    out_only = attention_forward(q, k, v, mask, prepared, return_attn=False)
    out_only = jax.block_until_ready(out_only)
    assert jnp.allclose(out_only, ref_out, atol=1e-4, rtol=1e-4), \
        "output mismatch (return_attn=False)"

    print("KERNEL_OK")
</pallas_src>

<mosaic_0001>
module attributes {stable_mosaic.version = 11 : i64} {
  func.func @_attention_kernel(%arg0: i32, %arg1: memref<2x8x32xf32, #tpu.memory_space<vmem>>, %arg2: memref<2x8x32xf32, #tpu.memory_space<vmem>>, %arg3: memref<2x8x32xf32, #tpu.memory_space<vmem>>, %arg4: memref<2x1x8xf32, #tpu.memory_space<vmem>>, %arg5: memref<3x32x32xf32, #tpu.memory_space<vmem>>, %arg6: memref<3x1x32xf32, #tpu.memory_space<vmem>>, %arg7: memref<32x32xf32, #tpu.memory_space<vmem>>, %arg8: memref<1x32xf32, #tpu.memory_space<vmem>>, %arg9: memref<2x8x32xf32, #tpu.memory_space<vmem>>, %arg10: memref<2x8x8xf32, #tpu.memory_space<vmem>>) attributes {dimension_semantics = [#tpu.dimension_semantics<parallel>], iteration_bounds = array<i64: 1>, scalar_prefetch = 0 : i64, scratch_operands = 0 : i64, tpu.core_type = #tpu.core_type<tc>, window_params = [{transform_indices = @transform_0, window_bounds = array<i64: 2, 8, 32>}, {transform_indices = @transform_1, window_bounds = array<i64: 2, 8, 32>}, {transform_indices = @transform_2, window_bounds = array<i64: 2, 8, 32>}, {transform_indices = @transform_3, window_bounds = array<i64: 2, 1, 8>}, {pipeline_mode = #tpu.pipeline_mode<synchronous>, transform_indices = @transform_4, window_bounds = array<i64: 3, 32, 32>}, {pipeline_mode = #tpu.pipeline_mode<synchronous>, transform_indices = @transform_5, window_bounds = array<i64: 3, 1, 32>}, {pipeline_mode = #tpu.pipeline_mode<synchronous>, transform_indices = @transform_6, window_bounds = array<i64: 32, 32>}, {pipeline_mode = #tpu.pipeline_mode<synchronous>, transform_indices = @transform_7, window_bounds = array<i64: 1, 32>}, {transform_indices = @transform_8, window_bounds = array<i64: 2, 8, 32>}, {transform_indices = @transform_9, window_bounds = array<i64: 2, 8, 8>}]} {
    %c0 = arith.constant 0 : index
    %c0_0 = arith.constant 0 : index
    %c0_1 = arith.constant 0 : index
    %0 = vector.load %arg1[%c0, %c0_0, %c0_1] : memref<2x8x32xf32, #tpu.memory_space<vmem>>, vector<2x8x32xf32>
    %1 = vector.shape_cast %0 : vector<2x8x32xf32> to vector<16x32xf32>
    %c0_2 = arith.constant 0 : index
    %c0_3 = arith.constant 0 : index
    %c0_4 = arith.constant 0 : index
    %2 = vector.load %arg5[%c0_2, %c0_3, %c0_4] : memref<3x32x32xf32, #tpu.memory_space<vmem>>, vector<1x32x32xf32>
    %3 = vector.shape_cast %2 : vector<1x32x32xf32> to vector<32x32xf32>
    %cst = arith.constant dense<0.000000e+00> : vector<16x32xf32>
    %4 = tpu.matmul %1, %3, %cst {dimension_numbers = #tpu.dot_dimension_numbers<[1], [0], [0], [1], [0, 0, 1, 1], [], []>} : vector<16x32xf32>, vector<32x32xf32>, vector<16x32xf32> -> vector<16x32xf32>
    %c0_5 = arith.constant 0 : index
    %c0_6 = arith.constant 0 : index
    %c0_7 = arith.constant 0 : index
    %5 = vector.load %arg6[%c0_5, %c0_6, %c0_7] : memref<3x1x32xf32, #tpu.memory_space<vmem>>, vector<1x1x32xf32>
    %6 = vector.shape_cast %5 : vector<1x1x32xf32> to vector<1x32xf32>
    %7 = vector.broadcast %6 : vector<1x32xf32> to vector<16x32xf32>
    %8 = arith.addf %4, %7 : vector<16x32xf32>
    %9 = vector.shape_cast %8 : vector<16x32xf32> to vector<2x8x32xf32>
    %c0_8 = arith.constant 0 : index
    %c0_9 = arith.constant 0 : index
    %c0_10 = arith.constant 0 : index
    %10 = vector.load %arg2[%c0_8, %c0_9, %c0_10] : memref<2x8x32xf32, #tpu.memory_space<vmem>>, vector<2x8x32xf32>
    %11 = vector.shape_cast %10 : vector<2x8x32xf32> to vector<16x32xf32>
    %c1 = arith.constant 1 : index
    %c0_11 = arith.constant 0 : index
    %c0_12 = arith.constant 0 : index
    %12 = vector.load %arg5[%c1, %c0_11, %c0_12] : memref<3x32x32xf32, #tpu.memory_space<vmem>>, vector<1x32x32xf32>
    %13 = vector.shape_cast %12 : vector<1x32x32xf32> to vector<32x32xf32>
    %cst_13 = arith.constant dense<0.000000e+00> : vector<16x32xf32>
    %14 = tpu.matmul %11, %13, %cst_13 {dimension_numbers = #tpu.dot_dimension_numbers<[1], [0], [0], [1], [0, 0, 1, 1], [], []>} : vector<16x32xf32>, vector<32x32xf32>, vector<16x32xf32> -> vector<16x32xf32>
    %c1_14 = arith.constant 1 : index
    %c0_15 = arith.constant 0 : index
    %c0_16 = arith.constant 0 : index
    %15 = vector.load %arg6[%c1_14, %c0_15, %c0_16] : memref<3x1x32xf32, #tpu.memory_space<vmem>>, vector<1x1x32xf32>
    %16 = vector.shape_cast %15 : vector<1x1x32xf32> to vector<1x32xf32>
    %17 = vector.broadcast %16 : vector<1x32xf32> to vector<16x32xf32>
    %18 = arith.addf %14, %17 : vector<16x32xf32>
    %19 = vector.shape_cast %18 : vector<16x32xf32> to vector<2x8x32xf32>
    %c0_17 = arith.constant 0 : index
    %c0_18 = arith.constant 0 : index
    %c0_19 = arith.constant 0 : index
    %20 = vector.load %arg3[%c0_17, %c0_18, %c0_19] : memref<2x8x32xf32, #tpu.memory_space<vmem>>, vector<2x8x32xf32>
    %21 = vector.shape_cast %20 : vector<2x8x32xf32> to vector<16x32xf32>
    %c2 = arith.constant 2 : index
    %c0_20 = arith.constant 0 : index
    %c0_21 = arith.constant 0 : index
    %22 = vector.load %arg5[%c2, %c0_20, %c0_21] : memref<3x32x32xf32, #tpu.memory_space<vmem>>, vector<1x32x32xf32>
    %23 = vector.shape_cast %22 : vector<1x32x32xf32> to vector<32x32xf32>
    %cst_22 = arith.constant dense<0.000000e+00> : vector<16x32xf32>
    %24 = tpu.matmul %21, %23, %cst_22 {dimension_numbers = #tpu.dot_dimension_numbers<[1], [0], [0], [1], [0, 0, 1, 1], [], []>} : vector<16x32xf32>, vector<32x32xf32>, vector<16x32xf32> -> vector<16x32xf32>
    %c2_23 = arith.constant 2 : index
    %c0_24 = arith.constant 0 : index
    %c0_25 = arith.constant 0 : index
    %25 = vector.load %arg6[%c2_23, %c0_24, %c0_25] : memref<3x1x32xf32, #tpu.memory_space<vmem>>, vector<1x1x32xf32>
    %26 = vector.shape_cast %25 : vector<1x1x32xf32> to vector<1x32xf32>
    %27 = vector.broadcast %26 : vector<1x32xf32> to vector<16x32xf32>
    %28 = arith.addf %24, %27 : vector<16x32xf32>
    %29 = vector.shape_cast %28 : vector<16x32xf32> to vector<2x8x32xf32>
    %cst_26 = arith.constant dense<0.000000e+00> : vector<2x8x8xf32>
    %30 = tpu.matmul %9, %19, %cst_26 {dimension_numbers = #tpu.dot_dimension_numbers<[2], [2], [1], [1], [0, 0, 0, 1, 1, 1], [0], [0]>} : vector<2x8x32xf32>, vector<2x8x32xf32>, vector<2x8x8xf32> -> vector<2x8x8xf32>
    %c0_27 = arith.constant 0 : index
    %c0_28 = arith.constant 0 : index
    %c0_29 = arith.constant 0 : index
    %31 = vector.load %arg4[%c0_27, %c0_28, %c0_29] : memref<2x1x8xf32, #tpu.memory_space<vmem>>, vector<2x1x8xf32>
    %32 = vector.broadcast %31 : vector<2x1x8xf32> to vector<2x8x8xf32>
    %33 = arith.addf %30, %32 : vector<2x8x8xf32>
    %cst_30 = arith.constant dense<0xFF800000> : vector<2x8xf32>
    %34 = vector.multi_reduction <maximumf>, %33, %cst_30 [2] : vector<2x8x8xf32> to vector<2x8xf32>
    %35 = vector.shape_cast %34 : vector<2x8xf32> to vector<2x8x1xf32>
    %36 = vector.broadcast %35 : vector<2x8x1xf32> to vector<2x8x8xf32>
    %37 = arith.subf %33, %36 : vector<2x8x8xf32>
    %38 = math.exp %37 : vector<2x8x8xf32>
    %cst_31 = arith.constant dense<0.000000e+00> : vector<2x8xf32>
    %39 = vector.multi_reduction <add>, %38, %cst_31 [2] : vector<2x8x8xf32> to vector<2x8xf32>
    %40 = vector.shape_cast %39 : vector<2x8xf32> to vector<2x8x1xf32>
    %41 = tpu.reciprocal %40 : vector<2x8x1xf32> -> vector<2x8x1xf32>
    %42 = vector.broadcast %41 : vector<2x8x1xf32> to vector<2x8x8xf32>
    %43 = arith.mulf %38, %42 : vector<2x8x8xf32>
    %cst_32 = arith.constant dense<0.000000e+00> : vector<2x8x32xf32>
    %44 = tpu.matmul %43, %29, %cst_32 {dimension_numbers = #tpu.dot_dimension_numbers<[2], [1], [1], [2], [0, 0, 0, 1, 1, 2], [0], [0]>} : vector<2x8x8xf32>, vector<2x8x32xf32>, vector<2x8x32xf32> -> vector<2x8x32xf32>
    %c0_33 = arith.constant 0 : index
    %c0_34 = arith.constant 0 : index
    %c0_35 = arith.constant 0 : index
    %45 = vector.load %arg10[%c0_33, %c0_34, %c0_35] : memref<2x8x8xf32, #tpu.memory_space<vmem>>, vector<2x8x8xf32>
    tpu.vector_store %arg10[%c0_33, %c0_34, %c0_35], %43 {strides = array<i32>} : memref<2x8x8xf32, #tpu.memory_space<vmem>>, vector<2x8x8xf32>,
    %46 = vector.shape_cast %44 : vector<2x8x32xf32> to vector<16x32xf32>
    %c0_36 = arith.constant 0 : index
    %c0_37 = arith.constant 0 : index
    %47 = vector.load %arg7[%c0_36, %c0_37] : memref<32x32xf32, #tpu.memory_space<vmem>>, vector<32x32xf32>
    %cst_38 = arith.constant dense<0.000000e+00> : vector<16x32xf32>
    %48 = tpu.matmul %46, %47, %cst_38 {dimension_numbers = #tpu.dot_dimension_numbers<[1], [0], [0], [1], [0, 0, 1, 1], [], []>} : vector<16x32xf32>, vector<32x32xf32>, vector<16x32xf32> -> vector<16x32xf32>
    %c0_39 = arith.constant 0 : index
    %c0_40 = arith.constant 0 : index
    %49 = vector.load %arg8[%c0_39, %c0_40] : memref<1x32xf32, #tpu.memory_space<vmem>>, vector<1x32xf32>
    %50 = vector.broadcast %49 : vector<1x32xf32> to vector<16x32xf32>
    %51 = arith.addf %48, %50 : vector<16x32xf32>
    %52 = vector.shape_cast %51 : vector<16x32xf32> to vector<2x8x32xf32>
    %c0_41 = arith.constant 0 : index
    %c0_42 = arith.constant 0 : index
    %c0_43 = arith.constant 0 : index
    %53 = vector.load %arg9[%c0_41, %c0_42, %c0_43] : memref<2x8x32xf32, #tpu.memory_space<vmem>>, vector<2x8x32xf32>
    tpu.vector_store %arg9[%c0_41, %c0_42, %c0_43], %52 {strides = array<i32>} : memref<2x8x32xf32, #tpu.memory_space<vmem>>, vector<2x8x32xf32>,
    return
  }
  func.func @transform_0(%arg0: i32) -> (i32, i32, i32) {
    %c0_i32 = arith.constant 0 : i32
    %c0_i32_0 = arith.constant 0 : i32
    %c0_i32_1 = arith.constant 0 : i32
    return %arg0, %c0_i32, %c0_i32_0 : i32, i32, i32
  }
  func.func @transform_1(%arg0: i32) -> (i32, i32, i32) {
    %c0_i32 = arith.constant 0 : i32
    %c0_i32_0 = arith.constant 0 : i32
    %c0_i32_1 = arith.constant 0 : i32
    return %arg0, %c0_i32, %c0_i32_0 : i32, i32, i32
  }
  func.func @transform_2(%arg0: i32) -> (i32, i32, i32) {
    %c0_i32 = arith.constant 0 : i32
    %c0_i32_0 = arith.constant 0 : i32
    %c0_i32_1 = arith.constant 0 : i32
    return %arg0, %c0_i32, %c0_i32_0 : i32, i32, i32
  }
  func.func @transform_3(%arg0: i32) -> (i32, i32, i32) {
    %c0_i32 = arith.constant 0 : i32
    %c0_i32_0 = arith.constant 0 : i32
    %c0_i32_1 = arith.constant 0 : i32
    return %arg0, %c0_i32, %c0_i32_0 : i32, i32, i32
  }
  func.func @transform_4(%arg0: i32) -> (i32, i32, i32) {
    %c0_i32 = arith.constant 0 : i32
    %c0_i32_0 = arith.constant 0 : i32
    %c0_i32_1 = arith.constant 0 : i32
    %c0_i32_2 = arith.constant 0 : i32
    return %c0_i32, %c0_i32_0, %c0_i32_1 : i32, i32, i32
  }
  func.func @transform_5(%arg0: i32) -> (i32, i32, i32) {
    %c0_i32 = arith.constant 0 : i32
    %c0_i32_0 = arith.constant 0 : i32
    %c0_i32_1 = arith.constant 0 : i32
    %c0_i32_2 = arith.constant 0 : i32
    return %c0_i32, %c0_i32_0, %c0_i32_1 : i32, i32, i32
  }
  func.func @transform_6(%arg0: i32) -> (i32, i32) {
    %c0_i32 = arith.constant 0 : i32
    %c0_i32_0 = arith.constant 0 : i32
    %c0_i32_1 = arith.constant 0 : i32
    return %c0_i32, %c0_i32_0 : i32, i32
  }
  func.func @transform_7(%arg0: i32) -> (i32, i32) {
    %c0_i32 = arith.constant 0 : i32
    %c0_i32_0 = arith.constant 0 : i32
    %c0_i32_1 = arith.constant 0 : i32
    return %c0_i32, %c0_i32_0 : i32, i32
  }
  func.func @transform_8(%arg0: i32) -> (i32, i32, i32) {
    %c0_i32 = arith.constant 0 : i32
    %c0_i32_0 = arith.constant 0 : i32
    %c0_i32_1 = arith.constant 0 : i32
    return %arg0, %c0_i32, %c0_i32_0 : i32, i32, i32
  }
  func.func @transform_9(%arg0: i32) -> (i32, i32, i32) {
    %c0_i32 = arith.constant 0 : i32
    %c0_i32_0 = arith.constant 0 : i32
    %c0_i32_1 = arith.constant 0 : i32
    return %arg0, %c0_i32, %c0_i32_0 : i32, i32, i32
  }
}

</mosaic_0001>

<llo_original>
// kernel: tpu_custom_call.1
$region0: #{tpu_custom_call.1}
  #allocation0 [shape = 'u32[]', space=smem, size = 0x4, offset = 0x4, fixed_abs, tag = 'smem constant byte address 0x4 - core index']
  #allocation1 [shape = 'u32[144,128]{1,0:T(1,128)}', space=vmem, size = 0x12000, scoped, tag = 'internal scratch']
  %s0 = inlined_call_operand.hbm [shape: f32[2,8,32], index: 0, kind: input, shape index: {}]
  %s1 = inlined_call_operand.hbm [shape: f32[2,8,32], index: 1, kind: input, shape index: {}]
  %s2 = inlined_call_operand.hbm [shape: f32[2,8,32], index: 2, kind: input, shape index: {}]
  %s3 = inlined_call_operand.vmem [shape: f32[2,1,8], index: 3, kind: input, shape index: {}]
  %s4 = inlined_call_operand.hbm [shape: f32[3,32,32], index: 4, kind: input, shape index: {}]
  %s5 = inlined_call_operand.vmem [shape: f32[3,1,32], index: 5, kind: input, shape index: {}]
  %s6 = inlined_call_operand.hbm [shape: f32[32,32], index: 6, kind: input, shape index: {}]
  %s7 = inlined_call_operand.vmem [shape: f32[1,32], index: 7, kind: input, shape index: {}]
  %s8 = inlined_call_operand.hbm [shape: f32[2,8,32], index: 8, kind: output, shape index: {0}]
  %s9 = inlined_call_operand.hbm [shape: f32[2,8,8], index: 9, kind: output, shape index: {1}]
  %10 = xla_tuple %s8, %s9
  %s11 = sld [smem:[#allocation0]]
  $region70: #{tpu_custom_call.1} parent=0
    _
  %s13 = ssub.s32 1, %s11
  %s14 = scalar_select 0, %s13, %s11
  $region1: #{tpu_custom_call.1} parent=0
    #allocation2 [shape = 'u8[8192]{0}', space=vmem, size = 0x2000, scoped, tag = 'input window, operand 0, single buffered']
    #allocation3 [shape = 's32[1]{0}', space=sflag, size = 0x4, scoped, tag = 'scoped memory for tpu_custom_call.1']
    #allocation4 [shape = 's32[1]{0}', space=sflag, size = 0x4, scoped, tag = 'scoped memory for tpu_custom_call.1']
    #allocation5 [shape = 'u8[8192]{0}', space=vmem, size = 0x2000, scoped, tag = 'input window, operand 1, single buffered']
    #allocation6 [shape = 's32[1]{0}', space=sflag, size = 0x4, scoped, tag = 'scoped memory for tpu_custom_call.1']
    #allocation7 [shape = 'u8[8192]{0}', space=vmem, size = 0x2000, scoped, tag = 'input window, operand 2, single buffered']
    #allocation8 [shape = 'u8[49152]{0}', space=vmem, size = 0xc000, scoped, tag = 'input window, operand 4, single buffered']
    #allocation9 [shape = 's32[1]{0}', space=sflag, size = 0x4, scoped, tag = 'scoped memory for tpu_custom_call.1']
    #allocation10 [shape = 'u8[16384]{0}', space=vmem, size = 0x4000, scoped, tag = 'input window, operand 6, single buffered']
    #allocation11 [shape = 'u8[8192]{0}', space=vmem, size = 0x2000, scoped, tag = 'output window, operand 0, single buffered']
    #allocation12 [shape = 'u8[8192]{0}', space=vmem, size = 0x2000, scoped, tag = 'output window, operand 1, single buffered']
    #allocation13 [shape = 's32[1]{0}', space=sflag, size = 0x4, scoped, tag = 'scoped memory for tpu_custom_call.1']
    %15 = vsyncpa [#allocation3], 0
    %16 = vsyncpa [#allocation6], 0
    %17 = vsyncpa [#allocation9], 0
    %18 = vsyncpa [#allocation4], 0
    %19 = vsyncpa [#allocation13], 0
    // Predicated region
    $region2: #{tpu_custom_call.1} parent=1 // pred_check
      _
    $region3: #{tpu_custom_call.1} parent=1 // pred_check_branch
      %21 = sbr.rel (0) target = $region5
    $region4: #{tpu_custom_call.1} parent=1 // pred_region
      %s23 = ssub.s32 256, 256
      %24 = vsyncadd [#allocation3], %s23
      %s25 = sshll.u32 [#allocation2], 4
      %s26 = int_to_ptr.vmem [resolvable:$true] %s25
      %31 = dma.hbm_to_vmem [thread:$0]  %s0, 256, %s26, [#allocation3], 128, 128, 8
    $region5: #{tpu_custom_call.1} parent=1 // pred_fallthru
      _
    // Predicated region
    $region6: #{tpu_custom_call.1} parent=1 // pred_check
      _
    $region7: #{tpu_custom_call.1} parent=1 // pred_check_branch
      %33 = sbr.rel (0) target = $region9
    $region8: #{tpu_custom_call.1} parent=1 // pred_region
      %s35 = ssub.s32 256, 256
      %36 = vsyncadd [#allocation6], %s35
      %s37 = sshll.u32 [#allocation5], 4
      %s38 = int_to_ptr.vmem [resolvable:$true] %s37
      %43 = dma.hbm_to_vmem [thread:$0]  %s1, 256, %s38, [#allocation6], 128, 128, 8
    $region9: #{tpu_custom_call.1} parent=1 // pred_fallthru
      _
    // Predicated region
    $region10: #{tpu_custom_call.1} parent=1 // pred_check
      _
    $region11: #{tpu_custom_call.1} parent=1 // pred_check_branch
      %45 = sbr.rel (0) target = $region13
    $region12: #{tpu_custom_call.1} parent=1 // pred_region
      %s47 = ssub.s32 256, 256
      %48 = vsyncadd [#allocation6], %s47
      %s49 = sshll.u32 [#allocation7], 4
      %s50 = int_to_ptr.vmem [resolvable:$true] %s49
      %55 = dma.hbm_to_vmem [thread:$0]  %s2, 256, %s50, [#allocation6], 128, 128, 8
    $region13: #{tpu_custom_call.1} parent=1 // pred_fallthru
      _
    // Predicated region
    $region14: #{tpu_custom_call.1} parent=1 // pred_check
      _
    $region15: #{tpu_custom_call.1} parent=1 // pred_check_branch
      %57 = sbr.rel (0) target = $region17
    $region16: #{tpu_custom_call.1} parent=1 // pred_region
      _
    $region17: #{tpu_custom_call.1} parent=1 // pred_fallthru
      _
    // Predicated region
    $region18: #{tpu_custom_call.1} parent=1 // pred_check
      _
    $region19: #{tpu_custom_call.1} parent=1 // pred_check_branch
      %59 = sbr.rel (0) target = $region21
    $region20: #{tpu_custom_call.1} parent=1 // pred_region
      %s61 = ssub.s32 1536, 1536
      %62 = vsyncadd [#allocation9], %s61
      %s63 = sshll.u32 [#allocation8], 4
      %s64 = int_to_ptr.vmem [resolvable:$true] %s63
      %69 = dma.hbm_to_vmem [thread:$0]  %s4, 1536, %s64, [#allocation9], 128, 128, 8
    $region21: #{tpu_custom_call.1} parent=1 // pred_fallthru
      _
    // Predicated region
    $region22: #{tpu_custom_call.1} parent=1 // pred_check
      _
    $region23: #{tpu_custom_call.1} parent=1 // pred_check_branch
      %71 = sbr.rel (0) target = $region25
    $region24: #{tpu_custom_call.1} parent=1 // pred_region
      _
    $region25: #{tpu_custom_call.1} parent=1 // pred_fallthru
      _
    // Predicated region
    $region26: #{tpu_custom_call.1} parent=1 // pred_check
      _
    $region27: #{tpu_custom_call.1} parent=1 // pred_check_branch
      %73 = sbr.rel (0) target = $region29
    $region28: #{tpu_custom_call.1} parent=1 // pred_region
      %s75 = ssub.s32 512, 512
      %76 = vsyncadd [#allocation9], %s75
      %s77 = sshll.u32 [#allocation10], 4
      %s78 = int_to_ptr.vmem [resolvable:$true] %s77
      %83 = dma.hbm_to_vmem [thread:$0]  %s6, 512, %s78, [#allocation9], 128, 128, 8
    $region29: #{tpu_custom_call.1} parent=1 // pred_fallthru
      _
    // Predicated region
    $region30: #{tpu_custom_call.1} parent=1 // pred_check
      _
    $region31: #{tpu_custom_call.1} parent=1 // pred_check_branch
      %85 = sbr.rel (0) target = $region33
    $region32: #{tpu_custom_call.1} parent=1 // pred_region
      _
    $region33: #{tpu_custom_call.1} parent=1 // pred_fallthru
      _
    // Predicated region
    $region34: #{tpu_custom_call.1} parent=1 // pred_check
      _
    $region35: #{tpu_custom_call.1} parent=1 // pred_check_branch
      %87 = sbr.rel (0) target = $region37
    $region36: #{tpu_custom_call.1} parent=1 // pred_region
      %88 = dma.done [#allocation3], 256
    $region37: #{tpu_custom_call.1} parent=1 // pred_fallthru
      _
    // Predicated region
    $region38: #{tpu_custom_call.1} parent=1 // pred_check
      _
    $region39: #{tpu_custom_call.1} parent=1 // pred_check_branch
      %90 = sbr.rel (0) target = $region41
    $region40: #{tpu_custom_call.1} parent=1 // pred_region
      %91 = dma.done [#allocation6], 256
    $region41: #{tpu_custom_call.1} parent=1 // pred_fallthru
      _
    // Predicated region
    $region42: #{tpu_custom_call.1} parent=1 // pred_check
      _
    $region43: #{tpu_custom_call.1} parent=1 // pred_check_branch
      %93 = sbr.rel (0) target = $region45
    $region44: #{tpu_custom_call.1} parent=1 // pred_region
      %94 = dma.done [#allocation6], 256
    $region45: #{tpu_custom_call.1} parent=1 // pred_fallthru
      _
    // Predicated region
    $region46: #{tpu_custom_call.1} parent=1 // pred_check
      _
    $region47: #{tpu_custom_call.1} parent=1 // pred_check_branch
      %96 = sbr.rel (0) target = $region49
    $region48: #{tpu_custom_call.1} parent=1 // pred_region
      %97 = dma.done [#allocation9], 1536
    $region49: #{tpu_custom_call.1} parent=1 // pred_fallthru
      _
    // Predicated region
    $region50: #{tpu_custom_call.1} parent=1 // pred_check
      _
    $region51: #{tpu_custom_call.1} parent=1 // pred_check_branch
      %99 = sbr.rel (0) target = $region53
    $region52: #{tpu_custom_call.1} parent=1 // pred_region
      %100 = dma.done [#allocation9], 512
    $region53: #{tpu_custom_call.1} parent=1 // pred_fallthru
      _
    %v101 = vld [vmem:[#allocation2] sm:$0xff]
    %v102 = vld [vmem:[#allocation2 + $0x8] sm:$0xff]
    %v103 = vld [vmem:[#allocation8] sm:$0xff]
    %v104 = vld [vmem:[#allocation8 + $0x8] sm:$0xff]
    %v105 = vld [vmem:[#allocation8 + $0x10] sm:$0xff]
    %v106 = vld [vmem:[#allocation8 + $0x18] sm:$0xff]
    %v107 = vld [vmem:[%s5] sm:$0x1]
    %v109 = vlaneseq
    %v110 = vshrl.u32 %v109, 7
    %v111 = vsub.s32 0, %v110
    %v112 = vrot.slane %v107, %v111
    %vm114 = vcmask 261120
    %v116 = vsel %vm114, %v101, 0
    %v119 = vsel %vm114, %v102, 0
    %121 = vmatprep.subr.mxu0 0.0
    %122 = vmatpush1.msra.mxu0 %v103
    %123 = vmatprep.subr.mxu0 0.0
    %124 = vmatpush1.msra.mxu0 %v104
    %125 = vmatprep.subr.mxu0 0.0
    %126 = vmatpush1.msra.mxu0 %v105
    %127 = vmatprep.subr.mxu0 0.0
    %128 = vmatpush1.msra.mxu0 %v106
    %129 = vmatprep.subr.mxu0 0.0
    %130 = vmatpush1.msra.mxu0 0.0
    %131 = vmatprep.subr.mxu0 0.0
    %132 = vmatpush1.msra.mxu0 0.0
    %133 = vmatprep.subr.mxu0 0.0
    %134 = vmatpush1.msra.mxu0 0.0
    %135 = vmatprep.subr.mxu0 0.0
    %136 = vmatpush1.msra.mxu0 0.0
    %137 = vmatprep.subr.mxu0 0.0
    %138 = vmatpush1.msra.mxu0 0.0
    %139 = vmatprep.subr.mxu0 0.0
    %140 = vmatpush1.msra.mxu0 0.0
    %141 = vmatprep.subr.mxu0 0.0
    %142 = vmatpush1.msra.mxu0 0.0
    %143 = vmatprep.subr.mxu0 0.0
    %144 = vmatpush1.msra.mxu0 0.0
    %145 = vmatprep.subr.mxu0 0.0
    %146 = vmatpush1.msra.mxu0 0.0
    %147 = vmatprep.subr.mxu0 0.0
    %148 = vmatpush1.msra.mxu0 0.0
    %149 = vmatprep.subr.mxu0 0.0
    %150 = vmatpush1.msra.mxu0 0.0
    %151 = vmatprep.subr.mxu0 0.0
    %152 = vmatpush1.msra.mxu0 0.0
    %153 = vmatprep.subr.mxu0 0.0
    %154 = vmatpush1.msra.mxu0 0.0
    %155 = vmatprep.subr.mxu0 0.0
    %156 = vmatpush1.msra.mxu0 0.0
    %157 = vmatprep.subr.mxu0 0.0
    %158 = vmatpush1.msra.mxu0 0.0
    %159 = vmatprep.subr.mxu0 0.0
    %160 = vmatpush1.msra.mxu0 0.0
    %161 = vmatprep.subr.mxu0 0.0
    %162 = vmatpush1.msra.mxu0 0.0
    %163 = vmatprep.subr.mxu0 0.0
    %164 = vmatpush1.msra.mxu0 0.0
    %165 = vmatprep.subr.mxu0 0.0
    %166 = vmatpush1.msra.mxu0 0.0
    %167 = vmatprep.subr.mxu0 0.0
    %168 = vmatpush1.msra.mxu0 0.0
    %169 = vmatprep.subr.mxu0 0.0
    %170 = vmatpush1.msra.mxu0 0.0
    %171 = vmatprep.subr.mxu0 0.0
    %172 = vmatpush1.msra.mxu0 0.0
    %173 = vmatprep.subr.mxu0 0.0
    %174 = vmatpush1.msra.mxu0 0.0
    %175 = vmatprep.subr.mxu0 0.0
    %176 = vmatpush1.msra.mxu0 0.0
    %177 = vmatprep.subr.mxu0 0.0
    %178 = vmatpush1.msra.mxu0 0.0
    %179 = vmatprep.subr.mxu0 0.0
    %180 = vmatpush1.msra.mxu0 0.0
    %181 = vmatprep.subr.mxu0 0.0
    %182 = vmatpush1.msra.mxu0 0.0
    %183 = vmatprep.subr.mxu0 0.0
    %184 = vmatpush1.msra.mxu0 0.0
    %185 = vmatprep.mubr.f32.mxu0 0.0
    %186 = vmatmul.mubr.f32.gmra.mrb[0].mxu0 %v116
    %v187 = vpop.f32.mrb[0].mxu0
    %v188 = vadd.f32 %v112, %v187
    %v189 = vpop.f32.mrb[0].mxu0
    %190 = vmatprep.mubr.f32.mxu0 0.0
    %191 = vmatmul.mubr.f32.gmra.mrb[0].mxu0 %v119
    %v192 = vpop.f32.mrb[0].mxu0
    %v193 = vadd.f32 %v112, %v192
    %v194 = vpop.f32.mrb[0].mxu0
    %195 = vdwg.mxu0
    %v196 = vld [vmem:[#allocation5] sm:$0xff]
    %v197 = vld [vmem:[#allocation5 + $0x8] sm:$0xff]
    %s198 = scalar_lea.vmem [#allocation8], 32
    %v199 = vld [vmem:[%s198] sm:$0xff]
    %v200 = vld [vmem:[%s198 + $0x8] sm:$0xff]
    %v201 = vld [vmem:[%s198 + $0x10] sm:$0xff]
    %v202 = vld [vmem:[%s198 + $0x18] sm:$0xff]
    %s203 = scalar_lea.vmem %s5, 1
    %v204 = vld [vmem:[%s203] sm:$0x1]
    %v206 = vlaneseq
    %v207 = vshrl.u32 %v206, 7
    %v208 = vsub.s32 0, %v207
    %v209 = vrot.slane %v204, %v208
    %v212 = vsel %vm114, %v196, 0
    %v215 = vsel %vm114, %v197, 0
    %217 = vmatprep.subr.mxu0 0.0
    %218 = vmatpush1.msra.mxu0 %v199
    %219 = vmatprep.subr.mxu0 0.0
    %220 = vmatpush1.msra.mxu0 %v200
    %221 = vmatprep.subr.mxu0 0.0
    %222 = vmatpush1.msra.mxu0 %v201
    %223 = vmatprep.subr.mxu0 0.0
    %224 = vmatpush1.msra.mxu0 %v202
    %225 = vmatprep.subr.mxu0 0.0
    %226 = vmatpush1.msra.mxu0 0.0
    %227 = vmatprep.subr.mxu0 0.0
    %228 = vmatpush1.msra.mxu0 0.0
    %229 = vmatprep.subr.mxu0 0.0
    %230 = vmatpush1.msra.mxu0 0.0
    %231 = vmatprep.subr.mxu0 0.0
    %232 = vmatpush1.msra.mxu0 0.0
    %233 = vmatprep.subr.mxu0 0.0
    %234 = vmatpush1.msra.mxu0 0.0
    %235 = vmatprep.subr.mxu0 0.0
    %236 = vmatpush1.msra.mxu0 0.0
    %237 = vmatprep.subr.mxu0 0.0
    %238 = vmatpush1.msra.mxu0 0.0
    %239 = vmatprep.subr.mxu0 0.0
    %240 = vmatpush1.msra.mxu0 0.0
    %241 = vmatprep.subr.mxu0 0.0
    %242 = vmatpush1.msra.mxu0 0.0
    %243 = vmatprep.subr.mxu0 0.0
    %244 = vmatpush1.msra.mxu0 0.0
    %245 = vmatprep.subr.mxu0 0.0
    %246 = vmatpush1.msra.mxu0 0.0
    %247 = vmatprep.subr.mxu0 0.0
    %248 = vmatpush1.msra.mxu0 0.0
    %249 = vmatprep.subr.mxu0 0.0
    %250 = vmatpush1.msra.mxu0 0.0
    %251 = vmatprep.subr.mxu0 0.0
    %252 = vmatpush1.msra.mxu0 0.0
    %253 = vmatprep.subr.mxu0 0.0
    %254 = vmatpush1.msra.mxu0 0.0
    %255 = vmatprep.subr.mxu0 0.0
    %256 = vmatpush1.msra.mxu0 0.0
    %257 = vmatprep.subr.mxu0 0.0
    %258 = vmatpush1.msra.mxu0 0.0
    %259 = vmatprep.subr.mxu0 0.0
    %260 = vmatpush1.msra.mxu0 0.0
    %261 = vmatprep.subr.mxu0 0.0
    %262 = vmatpush1.msra.mxu0 0.0
    %263 = vmatprep.subr.mxu0 0.0
    %264 = vmatpush1.msra.mxu0 0.0
    %265 = vmatprep.subr.mxu0 0.0
    %266 = vmatpush1.msra.mxu0 0.0
    %267 = vmatprep.subr.mxu0 0.0
    %268 = vmatpush1.msra.mxu0 0.0
    %269 = vmatprep.subr.mxu0 0.0
    %270 = vmatpush1.msra.mxu0 0.0
    %271 = vmatprep.subr.mxu0 0.0
    %272 = vmatpush1.msra.mxu0 0.0
    %273 = vmatprep.subr.mxu0 0.0
    %274 = vmatpush1.msra.mxu0 0.0
    %275 = vmatprep.subr.mxu0 0.0
    %276 = vmatpush1.msra.mxu0 0.0
    %277 = vmatprep.subr.mxu0 0.0
    %278 = vmatpush1.msra.mxu0 0.0
    %279 = vmatprep.subr.mxu0 0.0
    %280 = vmatpush1.msra.mxu0 0.0
    %281 = vmatprep.mubr.f32.mxu0 0.0
    %282 = vmatmul.mubr.f32.gmra.mrb[0].mxu0 %v212
    %v283 = vpop.f32.mrb[0].mxu0
    %v284 = vadd.f32 %v209, %v283
    %v285 = vpop.f32.mrb[0].mxu0
    %286 = vmatprep.mubr.f32.mxu0 0.0
    %287 = vmatmul.mubr.f32.gmra.mrb[0].mxu0 %v215
    %v288 = vpop.f32.mrb[0].mxu0
    %v289 = vadd.f32 %v209, %v288
    %v290 = vpop.f32.mrb[0].mxu0
    %291 = vdwg.mxu0
    %v292 = vld [vmem:[#allocation7] sm:$0xff]
    %v293 = vld [vmem:[#allocation7 + $0x8] sm:$0xff]
    %s294 = scalar_lea.vmem [#allocation8], 64
    %v295 = vld [vmem:[%s294] sm:$0xff]
    %v296 = vld [vmem:[%s294 + $0x8] sm:$0xff]
    %v297 = vld [vmem:[%s294 + $0x10] sm:$0xff]
    %v298 = vld [vmem:[%s294 + $0x18] sm:$0xff]
    %s299 = scalar_lea.vmem %s5, 2
    %v300 = vld [vmem:[%s299] sm:$0x1]
    %v302 = vlaneseq
    %v303 = vshrl.u32 %v302, 7
    %v304 = vsub.s32 0, %v303
    %v305 = vrot.slane %v300, %v304
    %v308 = vsel %vm114, %v292, 0
    %v311 = vsel %vm114, %v293, 0
    %313 = vmatprep.subr.mxu0 0.0
    %314 = vmatpush1.msra.mxu0 %v295
    %315 = vmatprep.subr.mxu0 0.0
    %316 = vmatpush1.msra.mxu0 %v296
    %317 = vmatprep.subr.mxu0 0.0
    %318 = vmatpush1.msra.mxu0 %v297
    %319 = vmatprep.subr.mxu0 0.0
    %320 = vmatpush1.msra.mxu0 %v298
    %321 = vmatprep.subr.mxu0 0.0
    %322 = vmatpush1.msra.mxu0 0.0
    %323 = vmatprep.subr.mxu0 0.0
    %324 = vmatpush1.msra.mxu0 0.0
    %325 = vmatprep.subr.mxu0 0.0
    %326 = vmatpush1.msra.mxu0 0.0
    %327 = vmatprep.subr.mxu0 0.0
    %328 = vmatpush1.msra.mxu0 0.0
    %329 = vmatprep.subr.mxu0 0.0
    %330 = vmatpush1.msra.mxu0 0.0
    %331 = vmatprep.subr.mxu0 0.0
    %332 = vmatpush1.msra.mxu0 0.0
    %333 = vmatprep.subr.mxu0 0.0
    %334 = vmatpush1.msra.mxu0 0.0
    %335 = vmatprep.subr.mxu0 0.0
    %336 = vmatpush1.msra.mxu0 0.0
    %337 = vmatprep.subr.mxu0 0.0
    %338 = vmatpush1.msra.mxu0 0.0
    %339 = vmatprep.subr.mxu0 0.0
    %340 = vmatpush1.msra.mxu0 0.0
    %341 = vmatprep.subr.mxu0 0.0
    %342 = vmatpush1.msra.mxu0 0.0
    %343 = vmatprep.subr.mxu0 0.0
    %344 = vmatpush1.msra.mxu0 0.0
    %345 = vmatprep.subr.mxu0 0.0
    %346 = vmatpush1.msra.mxu0 0.0
    %347 = vmatprep.subr.mxu0 0.0
    %348 = vmatpush1.msra.mxu0 0.0
    %349 = vmatprep.subr.mxu0 0.0
    %350 = vmatpush1.msra.mxu0 0.0
    %351 = vmatprep.subr.mxu0 0.0
    %352 = vmatpush1.msra.mxu0 0.0
    %353 = vmatprep.subr.mxu0 0.0
    %354 = vmatpush1.msra.mxu0 0.0
    %355 = vmatprep.subr.mxu0 0.0
    %356 = vmatpush1.msra.mxu0 0.0
    %357 = vmatprep.subr.mxu0 0.0
    %358 = vmatpush1.msra.mxu0 0.0
    %359 = vmatprep.subr.mxu0 0.0
    %360 = vmatpush1.msra.mxu0 0.0
    %361 = vmatprep.subr.mxu0 0.0
    %362 = vmatpush1.msra.mxu0 0.0
    %363 = vmatprep.subr.mxu0 0.0
    %364 = vmatpush1.msra.mxu0 0.0
    %365 = vmatprep.subr.mxu0 0.0
    %366 = vmatpush1.msra.mxu0 0.0
    %367 = vmatprep.subr.mxu0 0.0
    %368 = vmatpush1.msra.mxu0 0.0
    %369 = vmatprep.subr.mxu0 0.0
    %370 = vmatpush1.msra.mxu0 0.0
    %371 = vmatprep.subr.mxu0 0.0
    %372 = vmatpush1.msra.mxu0 0.0
    %373 = vmatprep.subr.mxu0 0.0
    %374 = vmatpush1.msra.mxu0 0.0
    %375 = vmatprep.subr.mxu0 0.0
    %376 = vmatpush1.msra.mxu0 0.0
    %377 = vmatprep.mubr.f32.mxu0 0.0
    %378 = vmatmul.mubr.f32.gmra.mrb[0].mxu0 %v308
    %v379 = vpop.f32.mrb[0].mxu0
    %v380 = vadd.f32 %v305, %v379
    %v381 = vpop.f32.mrb[0].mxu0
    %382 = vmatprep.mubr.f32.mxu0 0.0
    %383 = vmatmul.mubr.f32.gmra.mrb[0].mxu0 %v311
    %v384 = vpop.f32.mrb[0].mxu0
    %v385 = vadd.f32 %v305, %v384
    %v386 = vpop.f32.mrb[0].mxu0
    %387 = vdwg.mxu0
    %v388 = vld [vmem:[%s3] sm:$0x1]
    %v389 = vld [vmem:[%s3 + $0x1] sm:$0x1]
    %v392 = vlaneseq
    %v393 = vshrl.u32 %v392, 7
    %v394 = vsub.s32 0, %v393
    %v395 = vrot.slane %v388, %v394
    %v396 = vlaneseq
    %v397 = vshrl.u32 %v396, 7
    %v398 = vsub.s32 0, %v397
    %v399 = vrot.slane %v389, %v398
    %v403 = vsel %vm114, %v188, 0
    %v406 = vsel %vm114, %v284, 0
    %408 = vmatprep.subr.mxu0 0.0
    %409 = vmatpush1.xpose.msra.mxu0 %v406
    %410 = vmatprep.subr.mxu0 0.0
    %411 = vmatpush1.xpose.msra.mxu0 0.0
    %412 = vmatprep.subr.mxu0 0.0
    %413 = vmatpush1.xpose.msra.mxu0 0.0
    %414 = vmatprep.subr.mxu0 0.0
    %415 = vmatpush1.xpose.msra.mxu0 0.0
    %416 = vmatprep.subr.mxu0 0.0
    %417 = vmatpush1.xpose.msra.mxu0 0.0
    %418 = vmatprep.subr.mxu0 0.0
    %419 = vmatpush1.xpose.msra.mxu0 0.0
    %420 = vmatprep.subr.mxu0 0.0
    %421 = vmatpush1.xpose.msra.mxu0 0.0
    %422 = vmatprep.subr.mxu0 0.0
    %423 = vmatpush1.xpose.msra.mxu0 0.0
    %424 = vmatprep.subr.mxu0 0.0
    %425 = vmatpush1.xpose.msra.mxu0 0.0
    %426 = vmatprep.subr.mxu0 0.0
    %427 = vmatpush1.xpose.msra.mxu0 0.0
    %428 = vmatprep.subr.mxu0 0.0
    %429 = vmatpush1.xpose.msra.mxu0 0.0
    %430 = vmatprep.subr.mxu0 0.0
    %431 = vmatpush1.xpose.msra.mxu0 0.0
    %432 = vmatprep.subr.mxu0 0.0
    %433 = vmatpush1.xpose.msra.mxu0 0.0
    %434 = vmatprep.subr.mxu0 0.0
    %435 = vmatpush1.xpose.msra.mxu0 0.0
    %436 = vmatprep.subr.mxu0 0.0
    %437 = vmatpush1.xpose.msra.mxu0 0.0
    %438 = vmatprep.subr.mxu0 0.0
    %439 = vmatpush1.xpose.msra.mxu0 0.0
    %440 = vmatprep.subr.mxu0 0.0
    %441 = vmatpush1.xpose.msra.mxu0 0.0
    %442 = vmatprep.subr.mxu0 0.0
    %443 = vmatpush1.xpose.msra.mxu0 0.0
    %444 = vmatprep.subr.mxu0 0.0
    %445 = vmatpush1.xpose.msra.mxu0 0.0
    %446 = vmatprep.subr.mxu0 0.0
    %447 = vmatpush1.xpose.msra.mxu0 0.0
    %448 = vmatprep.subr.mxu0 0.0
    %449 = vmatpush1.xpose.msra.mxu0 0.0
    %450 = vmatprep.subr.mxu0 0.0
    %451 = vmatpush1.xpose.msra.mxu0 0.0
    %452 = vmatprep.subr.mxu0 0.0
    %453 = vmatpush1.xpose.msra.mxu0 0.0
    %454 = vmatprep.subr.mxu0 0.0
    %455 = vmatpush1.xpose.msra.mxu0 0.0
    %456 = vmatprep.subr.mxu0 0.0
    %457 = vmatpush1.xpose.msra.mxu0 0.0
    %458 = vmatprep.subr.mxu0 0.0
    %459 = vmatpush1.xpose.msra.mxu0 0.0
    %460 = vmatprep.subr.mxu0 0.0
    %461 = vmatpush1.xpose.msra.mxu0 0.0
    %462 = vmatprep.subr.mxu0 0.0
    %463 = vmatpush1.xpose.msra.mxu0 0.0
    %464 = vmatprep.subr.mxu0 0.0
    %465 = vmatpush1.xpose.msra.mxu0 0.0
    %466 = vmatprep.subr.mxu0 0.0
    %467 = vmatpush1.xpose.msra.mxu0 0.0
    %468 = vmatprep.subr.mxu0 0.0
    %469 = vmatpush1.xpose.msra.mxu0 0.0
    %470 = vmatprep.subr.mxu0 0.0
    %471 = vmatpush1.xpose.msra.mxu0 0.0
    %472 = vmatprep.mubr.f32.mxu0 0.0
    %473 = vmatmul.mubr.f32.gmra.mrb[0].mxu0 %v403
    %v474 = vpop.f32.mrb[0].mxu0
    %v475 = vadd.f32 %v395, %v474
    %v476 = vpop.f32.mrb[0].mxu0
    %477 = vdwg.mxu0
    %v479 = vsel %vm114, %v193, 0
    %v482 = vsel %vm114, %v289, 0
    %484 = vmatprep.subr.mxu0 0.0
    %485 = vmatpush1.xpose.msra.mxu0 %v482
    %486 = vmatprep.subr.mxu0 0.0
    %487 = vmatpush1.xpose.msra.mxu0 0.0
    %488 = vmatprep.subr.mxu0 0.0
    %489 = vmatpush1.xpose.msra.mxu0 0.0
    %490 = vmatprep.subr.mxu0 0.0
    %491 = vmatpush1.xpose.msra.mxu0 0.0
    %492 = vmatprep.subr.mxu0 0.0
    %493 = vmatpush1.xpose.msra.mxu0 0.0
    %494 = vmatprep.subr.mxu0 0.0
    %495 = vmatpush1.xpose.msra.mxu0 0.0
    %496 = vmatprep.subr.mxu0 0.0
    %497 = vmatpush1.xpose.msra.mxu0 0.0
    %498 = vmatprep.subr.mxu0 0.0
    %499 = vmatpush1.xpose.msra.mxu0 0.0
    %500 = vmatprep.subr.mxu0 0.0
    %501 = vmatpush1.xpose.msra.mxu0 0.0
    %502 = vmatprep.subr.mxu0 0.0
    %503 = vmatpush1.xpose.msra.mxu0 0.0
    %504 = vmatprep.subr.mxu0 0.0
    %505 = vmatpush1.xpose.msra.mxu0 0.0
    %506 = vmatprep.subr.mxu0 0.0
    %507 = vmatpush1.xpose.msra.mxu0 0.0
    %508 = vmatprep.subr.mxu0 0.0
    %509 = vmatpush1.xpose.msra.mxu0 0.0
    %510 = vmatprep.subr.mxu0 0.0
    %511 = vmatpush1.xpose.msra.mxu0 0.0
    %512 = vmatprep.subr.mxu0 0.0
    %513 = vmatpush1.xpose.msra.mxu0 0.0
    %514 = vmatprep.subr.mxu0 0.0
    %515 = vmatpush1.xpose.msra.mxu0 0.0
    %516 = vmatprep.subr.mxu0 0.0
    %517 = vmatpush1.xpose.msra.mxu0 0.0
    %518 = vmatprep.subr.mxu0 0.0
    %519 = vmatpush1.xpose.msra.mxu0 0.0
    %520 = vmatprep.subr.mxu0 0.0
    %521 = vmatpush1.xpose.msra.mxu0 0.0
    %522 = vmatprep.subr.mxu0 0.0
    %523 = vmatpush1.xpose.msra.mxu0 0.0
    %524 = vmatprep.subr.mxu0 0.0
    %525 = vmatpush1.xpose.msra.mxu0 0.0
    %526 = vmatprep.subr.mxu0 0.0
    %527 = vmatpush1.xpose.msra.mxu0 0.0
    %528 = vmatprep.subr.mxu0 0.0
    %529 = vmatpush1.xpose.msra.mxu0 0.0
    %530 = vmatprep.subr.mxu0 0.0
    %531 = vmatpush1.xpose.msra.mxu0 0.0
    %532 = vmatprep.subr.mxu0 0.0
    %533 = vmatpush1.xpose.msra.mxu0 0.0
    %534 = vmatprep.subr.mxu0 0.0
    %535 = vmatpush1.xpose.msra.mxu0 0.0
    %536 = vmatprep.subr.mxu0 0.0
    %537 = vmatpush1.xpose.msra.mxu0 0.0
    %538 = vmatprep.subr.mxu0 0.0
    %539 = vmatpush1.xpose.msra.mxu0 0.0
    %540 = vmatprep.subr.mxu0 0.0
    %541 = vmatpush1.xpose.msra.mxu0 0.0
    %542 = vmatprep.subr.mxu0 0.0
    %543 = vmatpush1.xpose.msra.mxu0 0.0
    %544 = vmatprep.subr.mxu0 0.0
    %545 = vmatpush1.xpose.msra.mxu0 0.0
    %546 = vmatprep.subr.mxu0 0.0
    %547 = vmatpush1.xpose.msra.mxu0 0.0
    %548 = vmatprep.mubr.f32.mxu0 0.0
    %549 = vmatmul.mubr.f32.gmra.mrb[0].mxu0 %v479
    %v550 = vpop.f32.mrb[0].mxu0
    %v551 = vadd.f32 %v399, %v550
    %v552 = vpop.f32.mrb[0].mxu0
    %553 = vdwg.mxu0
    %vm554 = vcmask 64512
    %v555 = vsel %vm554, %v475, -inf
    %556 = vmax.xlane.f32.xlu0 %v555
    %v557 = vpop.xlane.xlu0 %556
    %v558 = vsel %vm554, %v551, -inf
    %559 = vmax.xlane.f32.xlu0 %v558
    %v560 = vpop.xlane.xlu0 %559
    %v561 = vsub.f32 %v475, %v557
    %v562 = vsub.f32 %v551, %v560
    %v563 = vmul.f32 %v561, 1.442695
    %v564 = vpow.pop %v563
    %v565 = vmul.f32 %v562, 1.442695
    %v566 = vpow.pop %v565
    %v567 = vsel %vm554, %v564, 0.0
    %568 = vadd.xlane.f32.xlu0 %v567
    %v569 = vpop.xlane.xlu0 %568
    %v570 = vsel %vm554, %v566, 0.0
    %571 = vadd.xlane.f32.xlu0 %v570
    %v572 = vpop.xlane.xlu0 %571
    %v573 = vrcp.pop %v569
    %v574 = vrcp.pop %v572
    %v575 = vmul.f32 %v564, %v573
    %v576 = vmul.f32 %v566, %v574
    %v578 = vsel %vm554, %v575, 0
    %580 = vmatprep.subr.mxu0 0.0
    %581 = vmatpush1.msra.mxu0 %v380
    %582 = vmatprep.subr.mxu0 0.0
    %583 = vmatpush1.msra.mxu0 0.0
    %584 = vmatprep.subr.mxu0 0.0
    %585 = vmatpush1.msra.mxu0 0.0
    %586 = vmatprep.subr.mxu0 0.0
    %587 = vmatpush1.msra.mxu0 0.0
    %588 = vmatprep.subr.mxu0 0.0
    %589 = vmatpush1.msra.mxu0 0.0
    %590 = vmatprep.subr.mxu0 0.0
    %591 = vmatpush1.msra.mxu0 0.0
    %592 = vmatprep.subr.mxu0 0.0
    %593 = vmatpush1.msra.mxu0 0.0
    %594 = vmatprep.subr.mxu0 0.0
    %595 = vmatpush1.msra.mxu0 0.0
    %596 = vmatprep.subr.mxu0 0.0
    %597 = vmatpush1.msra.mxu0 0.0
    %598 = vmatprep.subr.mxu0 0.0
    %599 = vmatpush1.msra.mxu0 0.0
    %600 = vmatprep.subr.mxu0 0.0
    %601 = vmatpush1.msra.mxu0 0.0
    %602 = vmatprep.subr.mxu0 0.0
    %603 = vmatpush1.msra.mxu0 0.0
    %604 = vmatprep.subr.mxu0 0.0
    %605 = vmatpush1.msra.mxu0 0.0
    %606 = vmatprep.subr.mxu0 0.0
    %607 = vmatpush1.msra.mxu0 0.0
    %608 = vmatprep.subr.mxu0 0.0
    %609 = vmatpush1.msra.mxu0 0.0
    %610 = vmatprep.subr.mxu0 0.0
    %611 = vmatpush1.msra.mxu0 0.0
    %612 = vmatprep.subr.mxu0 0.0
    %613 = vmatpush1.msra.mxu0 0.0
    %614 = vmatprep.subr.mxu0 0.0
    %615 = vmatpush1.msra.mxu0 0.0
    %616 = vmatprep.subr.mxu0 0.0
    %617 = vmatpush1.msra.mxu0 0.0
    %618 = vmatprep.subr.mxu0 0.0
    %619 = vmatpush1.msra.mxu0 0.0
    %620 = vmatprep.subr.mxu0 0.0
    %621 = vmatpush1.msra.mxu0 0.0
    %622 = vmatprep.subr.mxu0 0.0
    %623 = vmatpush1.msra.mxu0 0.0
    %624 = vmatprep.subr.mxu0 0.0
    %625 = vmatpush1.msra.mxu0 0.0
    %626 = vmatprep.subr.mxu0 0.0
    %627 = vmatpush1.msra.mxu0 0.0
    %628 = vmatprep.subr.mxu0 0.0
    %629 = vmatpush1.msra.mxu0 0.0
    %630 = vmatprep.subr.mxu0 0.0
    %631 = vmatpush1.msra.mxu0 0.0
    %632 = vmatprep.subr.mxu0 0.0
    %633 = vmatpush1.msra.mxu0 0.0
    %634 = vmatprep.subr.mxu0 0.0
    %635 = vmatpush1.msra.mxu0 0.0
    %636 = vmatprep.subr.mxu0 0.0
    %637 = vmatpush1.msra.mxu0 0.0
    %638 = vmatprep.subr.mxu0 0.0
    %639 = vmatpush1.msra.mxu0 0.0
    %640 = vmatprep.subr.mxu0 0.0
    %641 = vmatpush1.msra.mxu0 0.0
    %642 = vmatprep.subr.mxu0 0.0
    %643 = vmatpush1.msra.mxu0 0.0
    %644 = vmatprep.mubr.f32.mxu0 0.0
    %645 = vmatmul.mubr.f32.gmra.mrb[0].mxu0 %v578
    %v646 = vpop.f32.mrb[0].mxu0
    %v647 = vadd.f32 0.0, %v646
    %v648 = vpop.f32.mrb[0].mxu0
    %649 = vdwg.mxu0
    %v651 = vsel %vm554, %v576, 0
    %653 = vmatprep.subr.mxu0 0.0
    %654 = vmatpush1.msra.mxu0 %v385
    %655 = vmatprep.subr.mxu0 0.0
    %656 = vmatpush1.msra.mxu0 0.0
    %657 = vmatprep.subr.mxu0 0.0
    %658 = vmatpush1.msra.mxu0 0.0
    %659 = vmatprep.subr.mxu0 0.0
    %660 = vmatpush1.msra.mxu0 0.0
    %661 = vmatprep.subr.mxu0 0.0
    %662 = vmatpush1.msra.mxu0 0.0
    %663 = vmatprep.subr.mxu0 0.0
    %664 = vmatpush1.msra.mxu0 0.0
    %665 = vmatprep.subr.mxu0 0.0
    %666 = vmatpush1.msra.mxu0 0.0
    %667 = vmatprep.subr.mxu0 0.0
    %668 = vmatpush1.msra.mxu0 0.0
    %669 = vmatprep.subr.mxu0 0.0
    %670 = vmatpush1.msra.mxu0 0.0
    %671 = vmatprep.subr.mxu0 0.0
    %672 = vmatpush1.msra.mxu0 0.0
    %673 = vmatprep.subr.mxu0 0.0
    %674 = vmatpush1.msra.mxu0 0.0
    %675 = vmatprep.subr.mxu0 0.0
    %676 = vmatpush1.msra.mxu0 0.0
    %677 = vmatprep.subr.mxu0 0.0
    %678 = vmatpush1.msra.mxu0 0.0
    %679 = vmatprep.subr.mxu0 0.0
    %680 = vmatpush1.msra.mxu0 0.0
    %681 = vmatprep.subr.mxu0 0.0
    %682 = vmatpush1.msra.mxu0 0.0
    %683 = vmatprep.subr.mxu0 0.0
    %684 = vmatpush1.msra.mxu0 0.0
    %685 = vmatprep.subr.mxu0 0.0
    %686 = vmatpush1.msra.mxu0 0.0
    %687 = vmatprep.subr.mxu0 0.0
    %688 = vmatpush1.msra.mxu0 0.0
    %689 = vmatprep.subr.mxu0 0.0
    %690 = vmatpush1.msra.mxu0 0.0
    %691 = vmatprep.subr.mxu0 0.0
    %692 = vmatpush1.msra.mxu0 0.0
    %693 = vmatprep.subr.mxu0 0.0
    %694 = vmatpush1.msra.mxu0 0.0
    %695 = vmatprep.subr.mxu0 0.0
    %696 = vmatpush1.msra.mxu0 0.0
    %697 = vmatprep.subr.mxu0 0.0
    %698 = vmatpush1.msra.mxu0 0.0
    %699 = vmatprep.subr.mxu0 0.0
    %700 = vmatpush1.msra.mxu0 0.0
    %701 = vmatprep.subr.mxu0 0.0
    %702 = vmatpush1.msra.mxu0 0.0
    %703 = vmatprep.subr.mxu0 0.0
    %704 = vmatpush1.msra.mxu0 0.0
    %705 = vmatprep.subr.mxu0 0.0
    %706 = vmatpush1.msra.mxu0 0.0
    %707 = vmatprep.subr.mxu0 0.0
    %708 = vmatpush1.msra.mxu0 0.0
    %709 = vmatprep.subr.mxu0 0.0
    %710 = vmatpush1.msra.mxu0 0.0
    %711 = vmatprep.subr.mxu0 0.0
    %712 = vmatpush1.msra.mxu0 0.0
    %713 = vmatprep.subr.mxu0 0.0
    %714 = vmatpush1.msra.mxu0 0.0
    %715 = vmatprep.subr.mxu0 0.0
    %716 = vmatpush1.msra.mxu0 0.0
    %717 = vmatprep.mubr.f32.mxu0 0.0
    %718 = vmatmul.mubr.f32.gmra.mrb[0].mxu0 %v651
    %v719 = vpop.f32.mrb[0].mxu0
    %v720 = vadd.f32 0.0, %v719
    %v721 = vpop.f32.mrb[0].mxu0
    %722 = vdwg.mxu0
    %723 = vst.msk [vmem:[#allocation12] sm:$0xff] %vm554, %v575
    %724 = vst.msk [vmem:[#allocation12 + $0x8] sm:$0xff] %vm554, %v576
    %v725 = vld [vmem:[#allocation10] sm:$0xff]
    %v726 = vld [vmem:[#allocation10 + $0x8] sm:$0xff]
    %v727 = vld [vmem:[#allocation10 + $0x10] sm:$0xff]
    %v728 = vld [vmem:[#allocation10 + $0x18] sm:$0xff]
    %v729 = vld [vmem:[%s7] sm:$0x1]
    %v731 = vlaneseq
    %v732 = vshrl.u32 %v731, 7
    %v733 = vsub.s32 0, %v732
    %v734 = vrot.slane %v729, %v733
    %v737 = vsel %vm114, %v647, 0
    %v740 = vsel %vm114, %v720, 0
    %742 = vmatprep.subr.mxu0 0.0
    %743 = vmatpush1.msra.mxu0 %v725
    %744 = vmatprep.subr.mxu0 0.0
    %745 = vmatpush1.msra.mxu0 %v726
    %746 = vmatprep.subr.mxu0 0.0
    %747 = vmatpush1.msra.mxu0 %v727
    %748 = vmatprep.subr.mxu0 0.0
    %749 = vmatpush1.msra.mxu0 %v728
    %750 = vmatprep.subr.mxu0 0.0
    %751 = vmatpush1.msra.mxu0 0.0
    %752 = vmatprep.subr.mxu0 0.0
    %753 = vmatpush1.msra.mxu0 0.0
    %754 = vmatprep.subr.mxu0 0.0
    %755 = vmatpush1.msra.mxu0 0.0
    %756 = vmatprep.subr.mxu0 0.0
    %757 = vmatpush1.msra.mxu0 0.0
    %758 = vmatprep.subr.mxu0 0.0
    %759 = vmatpush1.msra.mxu0 0.0
    %760 = vmatprep.subr.mxu0 0.0
    %761 = vmatpush1.msra.mxu0 0.0
    %762 = vmatprep.subr.mxu0 0.0
    %763 = vmatpush1.msra.mxu0 0.0
    %764 = vmatprep.subr.mxu0 0.0
    %765 = vmatpush1.msra.mxu0 0.0
    %766 = vmatprep.subr.mxu0 0.0
    %767 = vmatpush1.msra.mxu0 0.0
    %768 = vmatprep.subr.mxu0 0.0
    %769 = vmatpush1.msra.mxu0 0.0
    %770 = vmatprep.subr.mxu0 0.0
    %771 = vmatpush1.msra.mxu0 0.0
    %772 = vmatprep.subr.mxu0 0.0
    %773 = vmatpush1.msra.mxu0 0.0
    %774 = vmatprep.subr.mxu0 0.0
    %775 = vmatpush1.msra.mxu0 0.0
    %776 = vmatprep.subr.mxu0 0.0
    %777 = vmatpush1.msra.mxu0 0.0
    %778 = vmatprep.subr.mxu0 0.0
    %779 = vmatpush1.msra.mxu0 0.0
    %780 = vmatprep.subr.mxu0 0.0
    %781 = vmatpush1.msra.mxu0 0.0
    %782 = vmatprep.subr.mxu0 0.0
    %783 = vmatpush1.msra.mxu0 0.0
    %784 = vmatprep.subr.mxu0 0.0
    %785 = vmatpush1.msra.mxu0 0.0
    %786 = vmatprep.subr.mxu0 0.0
    %787 = vmatpush1.msra.mxu0 0.0
    %788 = vmatprep.subr.mxu0 0.0
    %789 = vmatpush1.msra.mxu0 0.0
    %790 = vmatprep.subr.mxu0 0.0
    %791 = vmatpush1.msra.mxu0 0.0
    %792 = vmatprep.subr.mxu0 0.0
    %793 = vmatpush1.msra.mxu0 0.0
    %794 = vmatprep.subr.mxu0 0.0
    %795 = vmatpush1.msra.mxu0 0.0
    %796 = vmatprep.subr.mxu0 0.0
    %797 = vmatpush1.msra.mxu0 0.0
    %798 = vmatprep.subr.mxu0 0.0
    %799 = vmatpush1.msra.mxu0 0.0
    %800 = vmatprep.subr.mxu0 0.0
    %801 = vmatpush1.msra.mxu0 0.0
    %802 = vmatprep.subr.mxu0 0.0
    %803 = vmatpush1.msra.mxu0 0.0
    %804 = vmatprep.subr.mxu0 0.0
    %805 = vmatpush1.msra.mxu0 0.0
    %806 = vmatprep.mubr.f32.mxu0 0.0
    %807 = vmatmul.mubr.f32.gmra.mrb[0].mxu0 %v737
    %v808 = vpop.f32.mrb[0].mxu0
    %v809 = vadd.f32 %v734, %v808
    %v810 = vpop.f32.mrb[0].mxu0
    %811 = vmatprep.mubr.f32.mxu0 0.0
    %812 = vmatmul.mubr.f32.gmra.mrb[0].mxu0 %v740
    %v813 = vpop.f32.mrb[0].mxu0
    %v814 = vadd.f32 %v734, %v813
    %v815 = vpop.f32.mrb[0].mxu0
    %816 = vdwg.mxu0
    %817 = vst.msk [vmem:[#allocation11] sm:$0xff] %vm114, %v809
    %818 = vst.msk [vmem:[#allocation11 + $0x8] sm:$0xff] %vm114, %v814
    // Predicated region
    $region54: #{tpu_custom_call.1} parent=1 // pred_check
      _
    $region55: #{tpu_custom_call.1} parent=1 // pred_check_branch
      %820 = sbr.rel (0) target = $region57
    $region56: #{tpu_custom_call.1} parent=1 // pred_region
      %s822 = ssub.s32 256, 256
      %823 = vsyncadd [#allocation4], %s822
      %s824 = sshll.u32 [#allocation11], 4
      %s825 = int_to_ptr.vmem [resolvable:$true] %s824
      %830 = dma.vmem_to_hbm [thread:$0]  %s825, 256, %s8, [#allocation4], 128, 128, 8
    $region57: #{tpu_custom_call.1} parent=1 // pred_fallthru
      _
    // Predicated region
    $region58: #{tpu_custom_call.1} parent=1 // pred_check
      _
    $region59: #{tpu_custom_call.1} parent=1 // pred_check_branch
      %832 = sbr.rel (0) target = $region61
    $region60: #{tpu_custom_call.1} parent=1 // pred_region
      %s834 = ssub.s32 256, 256
      %835 = vsyncadd [#allocation13], %s834
      %s836 = sshll.u32 [#allocation12], 4
      %s837 = int_to_ptr.vmem [resolvable:$true] %s836
      %842 = dma.vmem_to_hbm [thread:$0]  %s837, 256, %s9, [#allocation13], 128, 128, 8
    $region61: #{tpu_custom_call.1} parent=1 // pred_fallthru
      _
    // Predicated region
    $region62: #{tpu_custom_call.1} parent=1 // pred_check
      _
    $region63: #{tpu_custom_call.1} parent=1 // pred_check_branch
      %844 = sbr.rel (0) target = $region65
    $region64: #{tpu_custom_call.1} parent=1 // pred_region
      %845 = dma.done [#allocation4], 256
    $region65: #{tpu_custom_call.1} parent=1 // pred_fallthru
      _
    // Predicated region
    $region66: #{tpu_custom_call.1} parent=1 // pred_check
      _
    $region67: #{tpu_custom_call.1} parent=1 // pred_check_branch
      %847 = sbr.rel (0) target = $region69
    $region68: #{tpu_custom_call.1} parent=1 // pred_region
      %848 = dma.done [#allocation13], 256
    $region69: #{tpu_custom_call.1} parent=1 // pred_fallthru
      _
    %849 = vsyncpa [#allocation3], 1
    %850 = vsyncpa [#allocation6], 1
    %851 = vsyncpa [#allocation9], 1
    %852 = vsyncpa [#allocation4], 1
    %853 = vsyncpa [#allocation13], 1

</llo_original>
